<compile_context>
chip_gen: v7x
topology: tpu7x:2x2x1
jax: 0.10.0
libtpu: 0.0.40
codegen_flags: <defaults>
</compile_context>

<pallas_src>
import functools

import jax
import jax.numpy as jnp
from jax.experimental import pallas as pl
from jax.experimental.pallas import tpu as pltpu


# Padded VMEM bytes allowed per input block.  2 inputs x 2 pipeline buffers
# x 4 MiB + accumulator (< ~2 MiB) stays well inside the 32 MiB scoped limit
# requested below (valid on v5e/v6e/v7x), while each grid step still moves
# multiple MiB of real data so the ~0.35 us per-step overhead is amortized.
_BLOCK_BUDGET_BYTES = 4 << 20
_VMEM_LIMIT_BYTES = 32 << 20


def _round_up(x, m):
    return (x + m - 1) // m * m


def _mcdal_kernel(x1_ref, x2_ref, out_ref, acc_ref, *,
                  dis_type, class_axis, n_rows, tile_rows):
    """One grid step over a tile of rows; classes live on axis `class_axis`."""
    i = pl.program_id(0)

    @pl.when(i == 0)
    def _init():
        acc_ref[...] = jnp.zeros_like(acc_ref)

    x1 = x1_ref[...].astype(jnp.float32)
    x2 = x2_ref[...].astype(jnp.float32)
    ax = class_axis

    # numerically-stable softmax over the class axis; the normalization uses
    # the approximate EUP reciprocal (perf review) instead of a VALU divide.
    m1 = jnp.max(x1, axis=ax, keepdims=True)
    e1 = jnp.exp(x1 - m1)
    s1 = jnp.sum(e1, axis=ax, keepdims=True)
    p1 = e1 * pl.reciprocal(s1, approx=True)

    m2 = jnp.max(x2, axis=ax, keepdims=True)
    e2 = jnp.exp(x2 - m2)
    s2 = jnp.sum(e2, axis=ax, keepdims=True)
    p2 = e2 * pl.reciprocal(s2, approx=True)

    if dis_type == "L1":
        contrib = jnp.sum(jnp.abs(p1 - p2), axis=ax, keepdims=True)
    elif dis_type == "CE":
        logp1 = (x1 - m1) - jnp.log(s1)
        logp2 = (x2 - m2) - jnp.log(s2)
        contrib = jnp.sum(logp2 * p1 + logp1 * p2, axis=ax, keepdims=True)
        # Zero-padded rows give a uniform softmax which would add a spurious
        # -2*ln(C) per padded row for CE only (L1/L2/KL pad contributions are
        # exactly zero, so no mask is needed there).
        row = i * tile_rows + jax.lax.broadcasted_iota(
            jnp.int32, contrib.shape, 1 - ax)
        contrib = jnp.where(row < n_rows, contrib, 0.0)
    elif dis_type == "KL":
        logp1 = (x1 - m1) - jnp.log(s1)
        logp2 = (x2 - m2) - jnp.log(s2)
        # symmetric KL, algebraically simplified: p2*(lp2-lp1)+p1*(lp1-lp2)
        contrib = jnp.sum((p1 - p2) * (logp1 - logp2), axis=ax, keepdims=True)
    elif dis_type == "L2":
        d = p1 - p2
        contrib = jnp.sqrt(jnp.sum(d * d, axis=ax, keepdims=True))
    else:
        raise NotImplementedError(dis_type)

    # per-row partial sums (lane-dense (1, TILE) in the small-C path);
    # single scalar reduce + SMEM store only at the last step.
    acc_ref[...] += contrib

    @pl.when(i == pl.num_programs(0) - 1)
    def _fini():
        out_ref[0, 0] = jnp.sum(acc_ref[...])


def mcdal_net_loss(input1, input2, dis_type="L1"):
    """Pallas equivalent of McDalNetLoss.forward(input1, input2, dis_type)."""
    if dis_type == "Wasse":
        # TODO(synk): 'Wasse' (random Gaussian projection + torch.topk full sort
        # along the batch axis) has no clean Pallas equivalent; not implemented.
        raise NotImplementedError("dis_type='Wasse' is not implemented in Pallas")
    if dis_type not in ("L1", "CE", "KL", "L2"):
        raise NotImplementedError(dis_type)

    if input1.dtype not in (jnp.float32, jnp.bfloat16, jnp.float16):
        input1 = input1.astype(jnp.float32)
        input2 = input2.astype(jnp.float32)

    C = input1.shape[1]
    itemsize = jnp.dtype(input1.dtype).itemsize

    if C >= 128:
        # Classes already fill (at least) a full lane vector: keep classes on
        # the lane axis, rows on sublanes.  For 2-D (N, C) inputs this is a
        # no-op layout (no extra HBM copy).
        x1 = jnp.moveaxis(input1, 1, -1).reshape(-1, C)
        x2 = jnp.moveaxis(input2, 1, -1).reshape(-1, C)
        M = x1.shape[0]
        class_axis = 1
        padded_c = _round_up(C, 128)                      # lane padding in VMEM
        tile = _BLOCK_BUDGET_BYTES // (padded_c * itemsize)
        tile = max(8, (tile // 8) * 8)
        tile = min(tile, _round_up(M, 8))
        n_steps = pl.cdiv(M, tile)
        m_pad = n_steps * tile
        if m_pad != M:
            x1 = jnp.pad(x1, ((0, m_pad - M), (0, 0)))
            x2 = jnp.pad(x2, ((0, m_pad - M), (0, 0)))
        block = (tile, C)
        index_map = lambda i: (i, 0)
        acc_shape = (tile, 1)
    else:
        # Small class count (the common classifier case, e.g. C=12): transpose
        # so the rows land on the 128-lane axis -> dense vregs, dense DMA rows,
        # and the class softmax is a cheap reduction over <= 16 sublanes.
        x1 = jnp.moveaxis(input1, 1, 0).reshape(C, -1)
        x2 = jnp.moveaxis(input2, 1, 0).reshape(C, -1)
        M = x1.shape[1]
        class_axis = 0
        sub_mult = 8 * max(1, 4 // itemsize)              # sublane packing
        padded_c = _round_up(C, sub_mult)                 # sublane padding in VMEM
        tile = _BLOCK_BUDGET_BYTES // (padded_c * itemsize)
        tile = max(128, (tile // 128) * 128)
        tile = min(tile, _round_up(M, 128))
        n_steps = pl.cdiv(M, tile)
        m_pad = n_steps * tile
        if m_pad != M:
            x1 = jnp.pad(x1, ((0, 0), (0, m_pad - M)))
            x2 = jnp.pad(x2, ((0, 0), (0, m_pad - M)))
        block = (C, tile)
        index_map = lambda i: (0, i)
        acc_shape = (1, tile)

    kernel = functools.partial(_mcdal_kernel, dis_type=dis_type,
                               class_axis=class_axis, n_rows=M, tile_rows=tile)

    out = pl.pallas_call(
        kernel,
        out_shape=jax.ShapeDtypeStruct((1, 1), jnp.float32),
        grid_spec=pltpu.PrefetchScalarGridSpec(
            num_scalar_prefetch=0,
            grid=(n_steps,),
            in_specs=[pl.BlockSpec(block, index_map),
                      pl.BlockSpec(block, index_map)],
            out_specs=pl.BlockSpec(memory_space=pltpu.MemorySpace.SMEM),
            scratch_shapes=[pltpu.VMEM(acc_shape, jnp.float32)],
        ),
        compiler_params=pltpu.CompilerParams(
            dimension_semantics=("arbitrary",),
            vmem_limit_bytes=_VMEM_LIMIT_BYTES),
    )(x1, x2)

    raw = out[0, 0]

    if dis_type == "L1":
        return raw / (M * C)
    if dis_type == "CE":
        return -0.5 * raw / (M * C)
    if dis_type == "KL":
        return 0.5 * raw / (M * C)
    return (raw / M) / C   # L2


def _reference(x1, x2, dis_type):
    """Pure-JAX reference mirroring the PyTorch forward."""
    p1 = jax.nn.softmax(x1, axis=1)
    p2 = jax.nn.softmax(x2, axis=1)
    if dis_type == "L1":
        return jnp.mean(jnp.abs(p1 - p2))
    if dis_type == "CE":
        lp1 = jax.nn.log_softmax(x1, axis=1)
        lp2 = jax.nn.log_softmax(x2, axis=1)
        return 0.5 * (-jnp.mean(lp2 * p1) - jnp.mean(lp1 * p2))
    if dis_type == "KL":
        lp1 = jax.nn.log_softmax(x1, axis=1)
        lp2 = jax.nn.log_softmax(x2, axis=1)
        return 0.5 * (jnp.mean(p2 * (jnp.log(p2) - lp1))
                      + jnp.mean(p1 * (jnp.log(p1) - lp2)))
    if dis_type == "L2":
        C = x1.shape[1]
        return jnp.mean(jnp.sqrt(jnp.sum((p1 - p2) ** 2, axis=1))) / C
    raise NotImplementedError(dis_type)


if __name__ == "__main__":
    key = jax.random.PRNGKey(0)
    k1, k2, k3, k4 = jax.random.split(key, 4)

    # small class count (rows-on-lanes / transposed path), as the forward implies
    N, C = 64, 12
    a1 = jax.random.normal(k1, (N, C), jnp.float32)
    a2 = jax.random.normal(k2, (N, C), jnp.float32)

    # larger class count (classes-on-lanes path)
    N2, C2 = 48, 160
    b1 = jax.random.normal(k3, (N2, C2), jnp.float32)
    b2 = jax.random.normal(k4, (N2, C2), jnp.float32)

    for (x1, x2) in ((a1, a2), (b1, b2)):
        for dt in ("L1", "CE", "KL", "L2"):
            loss = jax.block_until_ready(mcdal_net_loss(x1, x2, dt))
            ref = jax.block_until_ready(_reference(x1, x2, dt))
            # approx EUP reciprocal (per perf review) shifts numerics slightly,
            # so compare with a mildly relaxed tolerance.
            assert jnp.allclose(loss, ref, rtol=1e-3, atol=1e-6), (dt, loss, ref)

    print("KERNEL_OK")
</pallas_src>

<mosaic_0001>
module attributes {stable_mosaic.version = 11 : i64} {
  func.func @_mcdal_kernel(%arg0: i32, %arg1: memref<12x128xf32, #tpu.memory_space<vmem>>, %arg2: memref<12x128xf32, #tpu.memory_space<vmem>>, %arg3: memref<1x1xf32, #tpu.memory_space<smem>>, %arg4: memref<1x128xf32, #tpu.memory_space<vmem>>) attributes {dimension_semantics = [#tpu.dimension_semantics<arbitrary>], iteration_bounds = array<i64: 1>, scalar_prefetch = 0 : i64, scratch_operands = 1 : i64, tpu.core_type = #tpu.core_type<tc>, window_params = [{transform_indices = @transform_0, window_bounds = array<i64: 12, 128>}, {transform_indices = @transform_1, window_bounds = array<i64: 12, 128>}, {transform_indices = @transform_2, window_bounds = array<i64: 1, 1>}]} {
    %c0_i32 = arith.constant 0 : i32
    %0 = arith.cmpi eq, %arg0, %c0_i32 : i32
    %1 = arith.extui %0 : i1 to i32
    %c0_i32_0 = arith.constant 0 : i32
    %2 = arith.cmpi ne, %1, %c0_i32_0 : i32
    scf.if %2 {
      %cst_14 = arith.constant 0.000000e+00 : f32
      %35 = vector.broadcast %cst_14 : f32 to vector<1x128xf32>
      %c0_15 = arith.constant 0 : index
      %c0_16 = arith.constant 0 : index
      %36 = vector.load %arg4[%c0_15, %c0_16] : memref<1x128xf32, #tpu.memory_space<vmem>>, vector<1x128xf32>
      tpu.vector_store %arg4[%c0_15, %c0_16], %35 {strides = array<i32>} : memref<1x128xf32, #tpu.memory_space<vmem>>, vector<1x128xf32>,
    } else {
    }
    %c0 = arith.constant 0 : index
    %c0_1 = arith.constant 0 : index
    %3 = vector.load %arg1[%c0, %c0_1] : memref<12x128xf32, #tpu.memory_space<vmem>>, vector<12x128xf32>
    %c0_2 = arith.constant 0 : index
    %c0_3 = arith.constant 0 : index
    %4 = vector.load %arg2[%c0_2, %c0_3] : memref<12x128xf32, #tpu.memory_space<vmem>>, vector<12x128xf32>
    %cst = arith.constant dense<0xFF800000> : vector<128xf32>
    %5 = vector.multi_reduction <maximumf>, %3, %cst [0] : vector<12x128xf32> to vector<128xf32>
    %6 = vector.shape_cast %5 : vector<128xf32> to vector<1x128xf32>
    %7 = vector.broadcast %6 : vector<1x128xf32> to vector<12x128xf32>
    %8 = arith.subf %3, %7 : vector<12x128xf32>
    %9 = math.exp %8 : vector<12x128xf32>
    %cst_4 = arith.constant dense<0.000000e+00> : vector<128xf32>
    %10 = vector.multi_reduction <add>, %9, %cst_4 [0] : vector<12x128xf32> to vector<128xf32>
    %11 = vector.shape_cast %10 : vector<128xf32> to vector<1x128xf32>
    %12 = tpu.reciprocal %11 {approx = true} : vector<1x128xf32> -> vector<1x128xf32>
    %13 = vector.broadcast %12 : vector<1x128xf32> to vector<12x128xf32>
    %14 = arith.mulf %9, %13 : vector<12x128xf32>
    %cst_5 = arith.constant dense<0xFF800000> : vector<128xf32>
    %15 = vector.multi_reduction <maximumf>, %4, %cst_5 [0] : vector<12x128xf32> to vector<128xf32>
    %16 = vector.shape_cast %15 : vector<128xf32> to vector<1x128xf32>
    %17 = vector.broadcast %16 : vector<1x128xf32> to vector<12x128xf32>
    %18 = arith.subf %4, %17 : vector<12x128xf32>
    %19 = math.exp %18 : vector<12x128xf32>
    %cst_6 = arith.constant dense<0.000000e+00> : vector<128xf32>
    %20 = vector.multi_reduction <add>, %19, %cst_6 [0] : vector<12x128xf32> to vector<128xf32>
    %21 = vector.shape_cast %20 : vector<128xf32> to vector<1x128xf32>
    %22 = tpu.reciprocal %21 {approx = true} : vector<1x128xf32> -> vector<1x128xf32>
    %23 = vector.broadcast %22 : vector<1x128xf32> to vector<12x128xf32>
    %24 = arith.mulf %19, %23 : vector<12x128xf32>
    %25 = arith.subf %14, %24 : vector<12x128xf32>
    %26 = math.absf %25 : vector<12x128xf32>
    %cst_7 = arith.constant dense<0.000000e+00> : vector<128xf32>
    %27 = vector.multi_reduction <add>, %26, %cst_7 [0] : vector<12x128xf32> to vector<128xf32>
    %28 = vector.shape_cast %27 : vector<128xf32> to vector<1x128xf32>
    %c0_8 = arith.constant 0 : index
    %c0_9 = arith.constant 0 : index
    %29 = vector.load %arg4[%c0_8, %c0_9] : memref<1x128xf32, #tpu.memory_space<vmem>>, vector<1x128xf32>
    %30 = arith.addf %29, %28 : vector<1x128xf32>
    %c0_10 = arith.constant 0 : index
    %c0_11 = arith.constant 0 : index
    %31 = vector.load %arg4[%c0_10, %c0_11] : memref<1x128xf32, #tpu.memory_space<vmem>>, vector<1x128xf32>
    tpu.vector_store %arg4[%c0_10, %c0_11], %30 {strides = array<i32>} : memref<1x128xf32, #tpu.memory_space<vmem>>, vector<1x128xf32>,
    %c0_i32_12 = arith.constant 0 : i32
    %32 = arith.cmpi eq, %arg0, %c0_i32_12 : i32
    %33 = arith.extui %32 : i1 to i32
    %c0_i32_13 = arith.constant 0 : i32
    %34 = arith.cmpi ne, %33, %c0_i32_13 : i32
    scf.if %34 {
      %c0_14 = arith.constant 0 : index
      %c0_15 = arith.constant 0 : index
      %35 = vector.load %arg4[%c0_14, %c0_15] : memref<1x128xf32, #tpu.memory_space<vmem>>, vector<1x128xf32>
      %36 = vector.shape_cast %35 : vector<1x128xf32> to vector<1x1x128xf32>
      %cst_16 = arith.constant dense<0.000000e+00> : vector<1xf32>
      %37 = vector.multi_reduction <add>, %36, %cst_16 [1, 2] : vector<1x1x128xf32> to vector<1xf32>
      %38 = vector.shape_cast %37 : vector<1xf32> to vector<1x1x1xf32>
      %39 = vector.extract %38[0, 0, 0] : f32 from vector<1x1x1xf32>
      %c0_17 = arith.constant 0 : index
      %c0_18 = arith.constant 0 : index
      %40 = memref.load %arg3[%c0_17, %c0_18] : memref<1x1xf32, #tpu.memory_space<smem>>
      memref.store %39, %arg3[%c0_17, %c0_18] : memref<1x1xf32, #tpu.memory_space<smem>>
    } else {
    }
    return
  }
  func.func @transform_0(%arg0: i32) -> (i32, i32) {
    %c0_i32 = arith.constant 0 : i32
    %c0_i32_0 = arith.constant 0 : i32
    return %c0_i32, %arg0 : i32, i32
  }
  func.func @transform_1(%arg0: i32) -> (i32, i32) {
    %c0_i32 = arith.constant 0 : i32
    %c0_i32_0 = arith.constant 0 : i32
    return %c0_i32, %arg0 : i32, i32
  }
  func.func @transform_2(%arg0: i32) -> (i32, i32) {
    %c0_i32 = arith.constant 0 : i32
    %c0_i32_0 = arith.constant 0 : i32
    %c0_i32_1 = arith.constant 0 : i32
    return %c0_i32, %c0_i32_0 : i32, i32
  }
}

</mosaic_0001>

<llo_original>
// kernel: tpu_custom_call.1
$region0: #{tpu_custom_call.1}
  #allocation0 [shape = 'u32[]', space=smem, size = 0x4, offset = 0x4, fixed_abs, tag = 'smem constant byte address 0x4 - core index']
  #allocation1 [shape = 'u32[144,128]{1,0:T(1,128)}', space=vmem, size = 0x12000, scoped, tag = 'internal scratch']
  #allocation2 [shape = 'f32[1,128]{1,0:T(1,128)}', space=vmem, size = 0x200, scoped, tag = 'scratch operand']
  %s0 = inlined_call_operand.hbm [shape: f32[12,128], index: 0, kind: input, shape index: {}]
  %s1 = inlined_call_operand.hbm [shape: f32[12,128], index: 1, kind: input, shape index: {}]
  %s2 = inlined_call_operand.hbm [shape: f32[1,1], index: 2, kind: output, shape index: {}]
  %s3 = sld [smem:[#allocation0]]
  $region34: #{tpu_custom_call.1} parent=0
    _
  %s5 = ssub.s32 1, %s3
  %s6 = scalar_select 0, %s5, %s3
  $region1: #{tpu_custom_call.1} parent=0
    #allocation3 [shape = 'u8[8192]{0}', space=vmem, size = 0x2000, scoped, tag = 'input window, operand 0, single buffered']
    #allocation4 [shape = 's32[1]{0}', space=sflag, size = 0x4, scoped, tag = 'scoped memory for tpu_custom_call.1']
    #allocation5 [shape = 's32[1]{0}', space=sflag, size = 0x4, scoped, tag = 'scoped memory for tpu_custom_call.1']
    #allocation6 [shape = 'u8[8192]{0}', space=vmem, size = 0x2000, scoped, tag = 'input window, operand 1, single buffered']
    #allocation7 [shape = 's32[1]{0}', space=sflag, size = 0x4, scoped, tag = 'scoped memory for tpu_custom_call.1']
    #allocation8 [shape = 'u8[512]{0}', space=smem, size = 0x200, scoped, tag = 'output window, operand 0, single buffered']
    %7 = vsyncpa [#allocation4], 0
    %8 = vsyncpa [#allocation7], 0
    %9 = vsyncpa [#allocation5], 0
    // Predicated region
    $region2: #{tpu_custom_call.1} parent=1 // pred_check
      _
    $region3: #{tpu_custom_call.1} parent=1 // pred_check_branch
      %11 = sbr.rel (0) target = $region5
    $region4: #{tpu_custom_call.1} parent=1 // pred_region
      %s13 = ssub.s32 256, 256
      %14 = vsyncadd [#allocation4], %s13
      %s15 = sshll.u32 [#allocation3], 4
      %s16 = int_to_ptr.vmem [resolvable:$true] %s15
      %21 = dma.hbm_to_vmem [thread:$0]  %s0, 256, %s16, [#allocation4], 128, 128, 8
    $region5: #{tpu_custom_call.1} parent=1 // pred_fallthru
      _
    // Predicated region
    $region6: #{tpu_custom_call.1} parent=1 // pred_check
      _
    $region7: #{tpu_custom_call.1} parent=1 // pred_check_branch
      %23 = sbr.rel (0) target = $region9
    $region8: #{tpu_custom_call.1} parent=1 // pred_region
      %s25 = ssub.s32 256, 256
      %26 = vsyncadd [#allocation7], %s25
      %s27 = sshll.u32 [#allocation6], 4
      %s28 = int_to_ptr.vmem [resolvable:$true] %s27
      %33 = dma.hbm_to_vmem [thread:$0]  %s1, 256, %s28, [#allocation7], 128, 128, 8
    $region9: #{tpu_custom_call.1} parent=1 // pred_fallthru
      _
    // Predicated region
    $region10: #{tpu_custom_call.1} parent=1 // pred_check
      _
    $region11: #{tpu_custom_call.1} parent=1 // pred_check_branch
      %35 = sbr.rel (0) target = $region13
    $region12: #{tpu_custom_call.1} parent=1 // pred_region
      %36 = dma.done [#allocation4], 256
    $region13: #{tpu_custom_call.1} parent=1 // pred_fallthru
      _
    // Predicated region
    $region14: #{tpu_custom_call.1} parent=1 // pred_check
      _
    $region15: #{tpu_custom_call.1} parent=1 // pred_check_branch
      %38 = sbr.rel (0) target = $region17
    $region16: #{tpu_custom_call.1} parent=1 // pred_region
      %39 = dma.done [#allocation7], 256
    $region17: #{tpu_custom_call.1} parent=1 // pred_fallthru
      _
    %p40 = scmp.eq.s32.totalorder 0, 0
    // Predicated region
    $region18: #{tpu_custom_call.1} parent=1 // pred_check
      %p41 = pneg %p40
    $region19: #{tpu_custom_call.1} parent=1 // pred_check_branch
      %43 = sbr.rel (%p41) target = $region21
    $region20: #{tpu_custom_call.1} parent=1 // pred_region
      %44 = vst [vmem:[#allocation2] sm:$0x1] 0.0
    $region21: #{tpu_custom_call.1} parent=1 // pred_fallthru
      _
    %v45 = vld [vmem:[#allocation3] sm:$0xff]
    %v46 = vld [vmem:[#allocation3 + $0x8] sm:$0xf]
    %v47 = vld [vmem:[#allocation6] sm:$0xff]
    %v48 = vld [vmem:[#allocation6 + $0x8] sm:$0xf]
    %vm49 = vcmask 1043456
    %v50 = vsel %vm49, %v46, -inf
    %v51 = vmax.f32 %v45, %v50
    %v52 = vrot.slane %v51, 4
    %v53 = vmax.f32 %v51, %v52
    %v54 = vrot.slane %v53, 2
    %v55 = vmax.f32 %v53, %v54
    %v56 = vrot.slane %v55, 1
    %v57 = vmax.f32 %v55, %v56
    %v58 = vsub.f32 %v45, %v57
    %v59 = vsub.f32 %v46, %v57
    %v60 = vmul.f32 %v58, 1.442695
    %v61 = vpow.pop %v60
    %v62 = vmul.f32 %v59, 1.442695
    %v63 = vpow.pop %v62
    %v64 = vsel %vm49, %v63, 0.0
    %v65 = vadd.f32 %v61, %v64
    %v66 = vrot.slane %v65, 4
    %v67 = vadd.f32 %v65, %v66
    %v68 = vrot.slane %v67, 2
    %v69 = vadd.f32 %v67, %v68
    %v70 = vrot.slane %v69, 1
    %v71 = vadd.f32 %v69, %v70
    %v72 = vrcp.pop %v71
    %v73 = vmul.f32 %v61, %v72
    %v74 = vmul.f32 %v63, %v72
    %v75 = vsel %vm49, %v48, -inf
    %v76 = vmax.f32 %v47, %v75
    %v77 = vrot.slane %v76, 4
    %v78 = vmax.f32 %v76, %v77
    %v79 = vrot.slane %v78, 2
    %v80 = vmax.f32 %v78, %v79
    %v81 = vrot.slane %v80, 1
    %v82 = vmax.f32 %v80, %v81
    %v83 = vsub.f32 %v47, %v82
    %v84 = vsub.f32 %v48, %v82
    %v85 = vmul.f32 %v83, 1.442695
    %v86 = vpow.pop %v85
    %v87 = vmul.f32 %v84, 1.442695
    %v88 = vpow.pop %v87
    %v89 = vsel %vm49, %v88, 0.0
    %v90 = vadd.f32 %v86, %v89
    %v91 = vrot.slane %v90, 4
    %v92 = vadd.f32 %v90, %v91
    %v93 = vrot.slane %v92, 2
    %v94 = vadd.f32 %v92, %v93
    %v95 = vrot.slane %v94, 1
    %v96 = vadd.f32 %v94, %v95
    %v97 = vrcp.pop %v96
    %v98 = vmul.f32 %v86, %v97
    %v99 = vmul.f32 %v88, %v97
    %v100 = vsub.f32 %v73, %v98
    %v101 = vsub.f32 %v74, %v99
    %v102 = vand.u32 2147483647, %v100
    %v103 = vand.u32 2147483647, %v101
    %v104 = vsel %vm49, %v103, 0.0
    %v105 = vadd.f32 %v102, %v104
    %v106 = vrot.slane %v105, 4
    %v107 = vadd.f32 %v105, %v106
    %v108 = vrot.slane %v107, 2
    %v109 = vadd.f32 %v107, %v108
    %v110 = vrot.slane %v109, 1
    %v111 = vadd.f32 %v109, %v110
    %v112 = vld [vmem:[#allocation2] sm:$0x1]
    %v113 = vadd.f32 %v112, %v111
    %114 = vst [vmem:[#allocation2] sm:$0x1] %v113
    // Predicated region
    $region22: #{tpu_custom_call.1} parent=1 // pred_check
      %p115 = pneg %p40
    $region23: #{tpu_custom_call.1} parent=1 // pred_check_branch
      %117 = sbr.rel (%p115) target = $region25
    $region24: #{tpu_custom_call.1} parent=1 // pred_region
      %v118 = vld [vmem:[#allocation2] sm:$0x1]
      %vm119 = vcmask 1040384
      %v120 = vsel %vm119, %v118, 0.0
      %121 = vadd.xlane.f32.xlu0 %v120
      %v122 = vpop.xlane.xlu0 %121
      %v123 = vrot.slane %v122, 4
      %v124 = vadd.f32 %v122, %v123
      %v125 = vrot.slane %v124, 2
      %v126 = vadd.f32 %v124, %v125
      %v127 = vrot.slane %v126, 1
      %v128 = vadd.f32 %v126, %v127
      %s129 = vtos %v128
      %s130 = scalar_lea.smem [#allocation8], 0
      %131 = sst [smem:[%s130]] %s129
    $region25: #{tpu_custom_call.1} parent=1 // pred_fallthru
      _
    // Predicated region
    $region26: #{tpu_custom_call.1} parent=1 // pred_check
      _
    $region27: #{tpu_custom_call.1} parent=1 // pred_check_branch
      %133 = sbr.rel (0) target = $region29
    $region28: #{tpu_custom_call.1} parent=1 // pred_region
      %s135 = ssub.s32 16, 16
      %136 = vsyncadd [#allocation5], %s135
      %139 = dma.smem_to_hbm [#allocation8], 16, %s2, [#allocation5]
    $region29: #{tpu_custom_call.1} parent=1 // pred_fallthru
      _
    // Predicated region
    $region30: #{tpu_custom_call.1} parent=1 // pred_check
      _
    $region31: #{tpu_custom_call.1} parent=1 // pred_check_branch
      %141 = sbr.rel (0) target = $region33
    $region32: #{tpu_custom_call.1} parent=1 // pred_region
      %142 = dma.done [#allocation5], 16
    $region33: #{tpu_custom_call.1} parent=1 // pred_fallthru
      _
    %143 = sfence
    %144 = vsyncpa [#allocation4], 1
    %145 = vsyncpa [#allocation7], 1
    %146 = vsyncpa [#allocation5], 1

</llo_original>
